<compile_context>
chip_gen: v7x
topology: tpu7x:2x2x1
jax: 0.10.0
libtpu: 0.0.40
codegen_flags: <defaults>
</compile_context>

<pallas_src>
import jax
import jax.numpy as jnp
from jax.experimental import pallas as pl
from jax.experimental.pallas import tpu as pltpu


def _make_nll_kernel(inv_b: float, from_logits: bool):
    """Builds the kernel body.  `inv_b` = 1 / (true, unpadded batch size)."""

    def kernel(pred_ref, tgt_ref, out_ref):
        i = pl.program_id(0)

        @pl.when(i == 0)
        def _init():
            out_ref[0, 0] = jnp.float32(0.0)

        # Load native-dtype block, upcast in-kernel (VPU cast; no extra XLA op).
        x = pred_ref[...].astype(jnp.float32)            # (TB, C)
        tgt = tgt_ref[...]                               # (TB, 1) int32
        tb, c = x.shape

        cls_ids = jax.lax.broadcasted_iota(jnp.int32, (tb, c), dimension=1)
        # select-gather: x[i, target[i]]  (no -inf * 0 NaN hazard)
        picked = jnp.sum(
            jnp.where(cls_ids == tgt, x, jnp.float32(0.0)),
            axis=-1, keepdims=True)                      # (TB, 1)

        if from_logits:
            # fused log_softmax: loss_i = logsumexp(x_i) - x_i[target_i]
            m = jnp.max(x, axis=-1, keepdims=True)
            lse = jnp.log(jnp.sum(jnp.exp(x - m), axis=-1, keepdims=True)) + m
            per_row = lse - picked
        else:
            # pred are already log-probabilities: loss_i = -pred_i[target_i]
            per_row = -picked

        # Rows whose label is < 0 are wrapper-added padding -> contribute 0.
        # (Out-of-range labels also contribute 0 instead of raising, unlike
        #  PyTorch nll_loss.)
        valid = tgt >= 0
        out_ref[0, 0] += jnp.sum(jnp.where(valid, per_row, jnp.float32(0.0)))

        @pl.when(i == pl.num_programs(0) - 1)
        def _finalize():
            out_ref[0, 0] = out_ref[0, 0] * jnp.float32(inv_b)

    return kernel


def _nll_loss_pallas(pred, target, *, from_logits: bool, block_b=None):
    b, c = pred.shape
    if block_b is None:
        block_b = 512            # (512, C) f32 block is tiny even for v7x VMEM
    if b <= block_b:
        block_b = b              # single full-array block
        pad = 0
    else:
        block_b = max(8, (block_b // 8) * 8)   # sublane-aligned batch tiling
        pad = (-b) % block_b

    tgt = target.astype(jnp.int32)
    if pad:
        pred = jnp.concatenate([pred, jnp.zeros((pad, c), pred.dtype)], axis=0)
        tgt = jnp.concatenate([tgt, jnp.full((pad,), -1, jnp.int32)], axis=0)
    bp = b + pad
    tgt2d = tgt.reshape(bp, 1)

    out = pl.pallas_call(
        _make_nll_kernel(1.0 / b, from_logits),
        out_shape=jax.ShapeDtypeStruct((1, 1), jnp.float32),
        grid_spec=pltpu.PrefetchScalarGridSpec(
            num_scalar_prefetch=0,
            grid=(bp // block_b,),
            in_specs=[
                pl.BlockSpec((block_b, c), lambda i: (i, 0)),   # pred / logits
                pl.BlockSpec((block_b, 1), lambda i: (i, 0)),   # labels (int32)
            ],
            out_specs=pl.BlockSpec((1, 1), lambda i: (0, 0),
                                   memory_space=pltpu.SMEM),
        ),
        compiler_params=pltpu.CompilerParams(
            dimension_semantics=("arbitrary",)),   # batch axis reduces into out
    )(pred, tgt2d)
    return out[0, 0]


def pointnet2_cls_loss(pred, target, trans_feat=None, *, block_b=None):
    """Equivalent of PointNet2ClsLoss.forward: F.nll_loss(pred, target).

    pred:   (B, C) log-probabilities (any float dtype; upcast in-kernel)
    target: (B,)   integer class labels
    trans_feat: ignored (as in the PyTorch module)
    """
    del trans_feat
    return _nll_loss_pallas(pred, target, from_logits=False, block_b=block_b)


def pointnet2_cls_loss_from_logits(logits, target, trans_feat=None, *,
                                   block_b=None):
    """Fused log_softmax + NLL (cross-entropy) on raw logits.

    Recommended production path: avoids materializing (B, C) log-probs in HBM.
    """
    del trans_feat
    return _nll_loss_pallas(logits, target, from_logits=True, block_b=block_b)


if __name__ == "__main__":
    key = jax.random.PRNGKey(0)
    k1, k2, k3, k4, k5 = jax.random.split(key, 5)

    # --- test 1: module-faithful path, single block (B=4, C=16) -------------
    B, C = 4, 16
    logits = jax.random.normal(k1, (B, C), dtype=jnp.float32)
    pred = jax.nn.log_softmax(logits, axis=-1)
    target = jax.random.randint(k2, (B,), 0, C, dtype=jnp.int32)
    trans_feat = jax.random.normal(k3, (B, 3, 3), dtype=jnp.float32)  # unused

    loss = jax.block_until_ready(pointnet2_cls_loss(pred, target, trans_feat))
    ref = -jnp.mean(pred[jnp.arange(B), target])
    assert jnp.allclose(loss, ref, atol=1e-6, rtol=1e-6), (loss, ref)

    # --- test 2: gridded + padded path (B=20, block_b=8 -> 3 tiles, 4 pads) --
    B2, C2 = 20, 16
    logits2 = jax.random.normal(k4, (B2, C2), dtype=jnp.float32)
    pred2 = jax.nn.log_softmax(logits2, axis=-1)
    target2 = jax.random.randint(k5, (B2,), 0, C2, dtype=jnp.int32)

    loss2 = jax.block_until_ready(
        pointnet2_cls_loss(pred2, target2, None, block_b=8))
    ref2 = -jnp.mean(pred2[jnp.arange(B2), target2])
    assert jnp.allclose(loss2, ref2, atol=1e-6, rtol=1e-6), (loss2, ref2)

    # --- test 3: fused logits path, gridded, f32 -----------------------------
    loss3 = jax.block_until_ready(
        pointnet2_cls_loss_from_logits(logits2, target2, None, block_b=8))
    ref3 = -jnp.mean(pred2[jnp.arange(B2), target2])
    assert jnp.allclose(loss3, ref3, atol=1e-5, rtol=1e-5), (loss3, ref3)

    # --- test 4: fused logits path, bf16 input (in-kernel upcast), one block -
    logits4 = logits2.astype(jnp.bfloat16)
    loss4 = jax.block_until_ready(
        pointnet2_cls_loss_from_logits(logits4, target2, None))
    lp4 = jax.nn.log_softmax(logits4.astype(jnp.float32), axis=-1)
    ref4 = -jnp.mean(lp4[jnp.arange(B2), target2])
    assert jnp.allclose(loss4, ref4, atol=1e-5, rtol=1e-5), (loss4, ref4)

    print("KERNEL_OK")
</pallas_src>

<mosaic_0001>
module attributes {stable_mosaic.version = 11 : i64} {
  func.func @kernel(%arg0: i32, %arg1: memref<4x16xf32, #tpu.memory_space<vmem>>, %arg2: memref<4x1xi32, #tpu.memory_space<vmem>>, %arg3: memref<1x1xf32, #tpu.memory_space<smem>>) attributes {dimension_semantics = [#tpu.dimension_semantics<arbitrary>], iteration_bounds = array<i64: 1>, scalar_prefetch = 0 : i64, scratch_operands = 0 : i64, tpu.core_type = #tpu.core_type<tc>, window_params = [{transform_indices = @transform_0, window_bounds = array<i64: 4, 16>}, {transform_indices = @transform_1, window_bounds = array<i64: 4, 1>}, {transform_indices = @transform_2, window_bounds = array<i64: 1, 1>}]} {
    %c0_i32 = arith.constant 0 : i32
    %0 = arith.cmpi eq, %arg0, %c0_i32 : i32
    %1 = arith.extui %0 : i1 to i32
    %c0_i32_0 = arith.constant 0 : i32
    %2 = arith.cmpi ne, %1, %c0_i32_0 : i32
    scf.if %2 {
      %cst_15 = arith.constant 0.000000e+00 : f32
      %c0_16 = arith.constant 0 : index
      %c0_17 = arith.constant 0 : index
      %28 = memref.load %arg3[%c0_16, %c0_17] : memref<1x1xf32, #tpu.memory_space<smem>>
      memref.store %cst_15, %arg3[%c0_16, %c0_17] : memref<1x1xf32, #tpu.memory_space<smem>>
    } else {
    }
    %c0 = arith.constant 0 : index
    %c0_1 = arith.constant 0 : index
    %3 = vector.load %arg1[%c0, %c0_1] : memref<4x16xf32, #tpu.memory_space<vmem>>, vector<4x16xf32>
    %c0_2 = arith.constant 0 : index
    %c0_3 = arith.constant 0 : index
    %4 = vector.load %arg2[%c0_2, %c0_3] : memref<4x1xi32, #tpu.memory_space<vmem>>, vector<4x1xi32>
    %5 = tpu.iota {dimensions = array<i32: 1>} : vector<4x16xi32>
    %6 = vector.broadcast %4 : vector<4x1xi32> to vector<4x16xi32>
    %7 = arith.cmpi eq, %5, %6 : vector<4x16xi32>
    %cst = arith.constant 0.000000e+00 : f32
    %8 = vector.broadcast %cst : f32 to vector<4x16xf32>
    %9 = arith.select %7, %3, %8 : vector<4x16xi1>, vector<4x16xf32>
    %cst_4 = arith.constant dense<0.000000e+00> : vector<4xf32>
    %10 = vector.multi_reduction <add>, %9, %cst_4 [1] : vector<4x16xf32> to vector<4xf32>
    %11 = vector.shape_cast %10 : vector<4xf32> to vector<4x1xf32>
    %cst_5 = arith.constant 0.000000e+00 : f32
    %12 = vector.broadcast %cst_5 : f32 to vector<4x1xf32>
    %13 = arith.subf %12, %11 : vector<4x1xf32>
    %c0_i32_6 = arith.constant 0 : i32
    %14 = vector.broadcast %c0_i32_6 : i32 to vector<4x1xi32>
    %15 = arith.cmpi sge, %4, %14 : vector<4x1xi32>
    %c0_7 = arith.constant 0 : index
    %c0_8 = arith.constant 0 : index
    %16 = memref.load %arg3[%c0_7, %c0_8] : memref<1x1xf32, #tpu.memory_space<smem>>
    %cst_9 = arith.constant 0.000000e+00 : f32
    %17 = vector.broadcast %cst_9 : f32 to vector<4x1xf32>
    %18 = arith.select %15, %13, %17 : vector<4x1xi1>, vector<4x1xf32>
    %19 = vector.shape_cast %18 : vector<4x1xf32> to vector<1x4x1xf32>
    %cst_10 = arith.constant dense<0.000000e+00> : vector<1xf32>
    %20 = vector.multi_reduction <add>, %19, %cst_10 [1, 2] : vector<1x4x1xf32> to vector<1xf32>
    %21 = vector.shape_cast %20 : vector<1xf32> to vector<1x1x1xf32>
    %22 = vector.extract %21[0, 0, 0] : f32 from vector<1x1x1xf32>
    %23 = arith.addf %16, %22 : f32
    %c0_11 = arith.constant 0 : index
    %c0_12 = arith.constant 0 : index
    %24 = memref.load %arg3[%c0_11, %c0_12] : memref<1x1xf32, #tpu.memory_space<smem>>
    memref.store %23, %arg3[%c0_11, %c0_12] : memref<1x1xf32, #tpu.memory_space<smem>>
    %c0_i32_13 = arith.constant 0 : i32
    %25 = arith.cmpi eq, %arg0, %c0_i32_13 : i32
    %26 = arith.extui %25 : i1 to i32
    %c0_i32_14 = arith.constant 0 : i32
    %27 = arith.cmpi ne, %26, %c0_i32_14 : i32
    scf.if %27 {
      %c0_15 = arith.constant 0 : index
      %c0_16 = arith.constant 0 : index
      %28 = memref.load %arg3[%c0_15, %c0_16] : memref<1x1xf32, #tpu.memory_space<smem>>
      %cst_17 = arith.constant 2.500000e-01 : f32
      %29 = arith.mulf %28, %cst_17 : f32
      %c0_18 = arith.constant 0 : index
      %c0_19 = arith.constant 0 : index
      %30 = memref.load %arg3[%c0_18, %c0_19] : memref<1x1xf32, #tpu.memory_space<smem>>
      memref.store %29, %arg3[%c0_18, %c0_19] : memref<1x1xf32, #tpu.memory_space<smem>>
    } else {
    }
    return
  }
  func.func @transform_0(%arg0: i32) -> (i32, i32) {
    %c0_i32 = arith.constant 0 : i32
    %c0_i32_0 = arith.constant 0 : i32
    return %arg0, %c0_i32 : i32, i32
  }
  func.func @transform_1(%arg0: i32) -> (i32, i32) {
    %c0_i32 = arith.constant 0 : i32
    %c0_i32_0 = arith.constant 0 : i32
    return %arg0, %c0_i32 : i32, i32
  }
  func.func @transform_2(%arg0: i32) -> (i32, i32) {
    %c0_i32 = arith.constant 0 : i32
    %c0_i32_0 = arith.constant 0 : i32
    %c0_i32_1 = arith.constant 0 : i32
    return %c0_i32, %c0_i32_0 : i32, i32
  }
}

</mosaic_0001>

<llo_original>
// kernel: tpu_custom_call.1
$region0: #{tpu_custom_call.1}
  #allocation0 [shape = 'u32[]', space=smem, size = 0x4, offset = 0x4, fixed_abs, tag = 'smem constant byte address 0x4 - core index']
  #allocation1 [shape = 'u32[144,128]{1,0:T(1,128)}', space=vmem, size = 0x12000, scoped, tag = 'internal scratch']
  %s0 = inlined_call_operand.vmem [shape: f32[4,16], index: 0, kind: input, shape index: {}]
  %s1 = inlined_call_operand.vmem [shape: s32[4,1], index: 1, kind: input, shape index: {}]
  %s2 = inlined_call_operand.hbm [shape: f32[1,1], index: 2, kind: output, shape index: {}]
  %s3 = sld [smem:[#allocation0]]
  $region26: #{tpu_custom_call.1} parent=0
    _
  %s5 = ssub.s32 1, %s3
  %s6 = scalar_select 0, %s5, %s3
  $region1: #{tpu_custom_call.1} parent=0
    #allocation2 [shape = 'u8[512]{0}', space=smem, size = 0x200, scoped, tag = 'output window, operand 0, single buffered']
    #allocation3 [shape = 's32[1]{0}', space=sflag, size = 0x4, scoped, tag = 'scoped memory for tpu_custom_call.1']
    %7 = vsyncpa [#allocation3], 0
    // Predicated region
    $region2: #{tpu_custom_call.1} parent=1 // pred_check
      _
    $region3: #{tpu_custom_call.1} parent=1 // pred_check_branch
      %9 = sbr.rel (0) target = $region5
    $region4: #{tpu_custom_call.1} parent=1 // pred_region
      _
    $region5: #{tpu_custom_call.1} parent=1 // pred_fallthru
      _
    // Predicated region
    $region6: #{tpu_custom_call.1} parent=1 // pred_check
      _
    $region7: #{tpu_custom_call.1} parent=1 // pred_check_branch
      %11 = sbr.rel (0) target = $region9
    $region8: #{tpu_custom_call.1} parent=1 // pred_region
      _
    $region9: #{tpu_custom_call.1} parent=1 // pred_fallthru
      _
    %p12 = scmp.eq.s32.totalorder 0, 0
    // Predicated region
    $region10: #{tpu_custom_call.1} parent=1 // pred_check
      %p13 = pneg %p12
    $region11: #{tpu_custom_call.1} parent=1 // pred_check_branch
      %15 = sbr.rel (%p13) target = $region13
    $region12: #{tpu_custom_call.1} parent=1 // pred_region
      %s16 = scalar_lea.smem [#allocation2], 0
      %17 = sst [smem:[%s16]] 0.0
    $region13: #{tpu_custom_call.1} parent=1 // pred_fallthru
      _
    %v18 = vld [vmem:[%s0] sm:$0xf]
    %v19 = vld [vmem:[%s1] sm:$0xf]
    %v20 = vlaneseq
    %v21 = vand.u32 %v20, 127
    %22 = vset.pattern.permute.xlu0 0
    %23 = vperm.xlu0 %22, %v19
    %v24 = vpop.permute.xlu0 %23
    %vm25 = vcmp.eq.s32.totalorder %v21, %v24
    %v26 = vsel %vm25, %v18, 0.0
    %vm27 = vcmask 125952
    %v28 = vsel %vm27, %v26, 0.0
    %29 = vadd.xlane.f32.xlu0 %v28
    %v30 = vpop.xlane.xlu0 %29
    %v31 = vsub.f32 0.0, %v30
    %vm32 = vcmp.ge.s32.totalorder %v19, 0
    %s33 = sld [smem:[#allocation2]]
    %v34 = vsel %vm32, %v31, 0.0
    %vm35 = vcmask 3072
    %v36 = vsel %vm35, %v34, 0.0
    %37 = vadd.xlane.f32.xlu0 %v36
    %v38 = vpop.xlane.xlu0 %37
    %v39 = vrot.slane %v38, 4
    %v40 = vadd.f32 %v38, %v39
    %v41 = vrot.slane %v40, 2
    %v42 = vadd.f32 %v40, %v41
    %v43 = vrot.slane %v42, 1
    %v44 = vadd.f32 %v42, %v43
    %s45 = vtos %v44
    %s46 = sadd.f32 %s33, %s45
    %s47 = scalar_lea.smem [#allocation2], 0
    %48 = sst [smem:[%s47]] %s46
    // Predicated region
    $region14: #{tpu_custom_call.1} parent=1 // pred_check
      %p49 = pneg %p12
    $region15: #{tpu_custom_call.1} parent=1 // pred_check_branch
      %51 = sbr.rel (%p49) target = $region17
    $region16: #{tpu_custom_call.1} parent=1 // pred_region
      %s52 = sld [smem:[#allocation2]]
      %s53 = smul.f32 %s52, 0.25
      %54 = sst [smem:[%s47]] %s53
    $region17: #{tpu_custom_call.1} parent=1 // pred_fallthru
      _
    // Predicated region
    $region18: #{tpu_custom_call.1} parent=1 // pred_check
      _
    $region19: #{tpu_custom_call.1} parent=1 // pred_check_branch
      %56 = sbr.rel (0) target = $region21
    $region20: #{tpu_custom_call.1} parent=1 // pred_region
      %s58 = ssub.s32 16, 16
      %59 = vsyncadd [#allocation3], %s58
      %62 = dma.smem_to_hbm [#allocation2], 16, %s2, [#allocation3]
    $region21: #{tpu_custom_call.1} parent=1 // pred_fallthru
      _
    // Predicated region
    $region22: #{tpu_custom_call.1} parent=1 // pred_check
      _
    $region23: #{tpu_custom_call.1} parent=1 // pred_check_branch
      %64 = sbr.rel (0) target = $region25
    $region24: #{tpu_custom_call.1} parent=1 // pred_region
      %65 = dma.done [#allocation3], 16
    $region25: #{tpu_custom_call.1} parent=1 // pred_fallthru
      _
    %66 = sfence
    %67 = vsyncpa [#allocation3], 1

</llo_original>
